<compile_context>
chip_gen: v7x
topology: tpu7x:2x2x1
jax: 0.10.0
libtpu: 0.0.40
codegen_flags: <defaults>
</compile_context>

<pallas_src>
import math
from functools import partial
from itertools import permutations

import jax
import jax.numpy as jnp
import numpy as np
from jax import lax
from jax.experimental import pallas as pl
from jax.experimental.pallas import tpu as pltpu

BALANCE_FACTOR = 1.0
# Deterministic "parameter" init (matches nn.Parameter(torch.Tensor([1.0]))).
# Only consumed on the distance branch, which is not exercised here.
BALANCE_FACTOR_PARAM = jnp.float32(BALANCE_FACTOR)
# TODO(synk): float64 parameter dtype and the distance_predictions/targets
# branch (combined loss with balance_factor) are not implemented here.

_PI = math.pi
_HALF_PI = math.pi / 2.0
_INV_PI = 1.0 / math.pi


def _rmspe_kernel(pred_ref, tgt_ref, out_ref, *, n, num_chunks, masks_by_size):
    """pred_ref/tgt_ref: (n, s_tile, 128) VMEM tiles; out_ref: (8,128) partial sums."""
    pi = jnp.float32(_PI)
    half_pi = jnp.float32(_HALF_PI)
    inv_pi = jnp.float32(_INV_PI)
    inv_n = jnp.float32(1.0 / n)
    full_mask = (1 << n) - 1

    def chunk_body(c, acc):
        # One (8,128)-vreg batch chunk of the tile (aligned dynamic slice).
        base = pl.multiple_of(c * 8, 8)
        pred = pred_ref[:, pl.ds(base, 8), :]        # (n, 8, 128) load
        tgt = tgt_ref[:, pl.ds(base, 8), :]          # (n, 8, 128) load
        pred_rows = [pred[i] for i in range(n)]      # static vreg picks
        tgt_rows = [tgt[j] for j in range(n)]

        # n*n wrapped squared errors, each an (8,128) vreg (VPU only).
        # mod(x, pi) == x - pi*floor(x/pi)  (same sign convention as torch %).
        sq = []
        for i in range(n):
            p = pred_rows[i]
            row = []
            for j in range(n):
                x = (p - tgt_rows[j]) + half_pi
                x = x - pi * jnp.floor(x * inv_pi)
                w = x - half_pi
                row.append(w * w)
            sq.append(row)

        # Assignment subset-DP over trace-time-constant masks (popcount order):
        # cost[S] = min_{j in S} cost[S\{j}] + sq[|S|-1][j];
        # cost[full] == min-permutation cost == Hungarian optimum.
        cost = {}
        for mask in masks_by_size:
            k = bin(mask).count("1")                 # prediction row index = k-1
            best = None
            for j in range(n):
                bit = 1 << j
                if not (mask & bit):
                    continue
                rest = mask ^ bit
                cand = sq[k - 1][j] if rest == 0 else cost[rest] + sq[k - 1][j]
                best = cand if best is None else jnp.minimum(best, cand)
            cost[mask] = best
        min_cost = cost[full_mask]                   # (8,128)

        # Zero-padded samples give min_cost == 0 -> contribute 0 to the sum.
        return acc + jnp.sqrt(min_cost * inv_n)

    acc = lax.fori_loop(0, num_chunks, chunk_body,
                        jnp.zeros((8, 128), jnp.float32))
    out_ref[...] = acc                               # lane-dense (8,128) store


def rmspe_loss(doa_predictions, doa_targets, *, max_sublanes_per_tile=256):
    """RMSPE loss (distance_targets=None path of the PyTorch module)."""
    B, n = doa_predictions.shape
    if n > 8:
        raise ValueError("subset-DP assignment limited to n <= 8 sources")
    masks_by_size = sorted(range(1, 1 << n), key=lambda m: bin(m).count("1"))

    # Batch layout: 128-sample lane rows, tiles of up to 256 sublane rows
    # (32K samples per grid step -> ~0.8 MB of input DMA per step at n=3).
    S = pl.cdiv(B, 128)                              # lane rows
    S_aligned = ((S + 7) // 8) * 8                   # sublane multiple
    s_tile = min(max_sublanes_per_tile, S_aligned)
    if S_aligned > 8:                                # aim for >=2 grid steps (v7x megacore)
        s_tile = min(s_tile, max(8, ((S_aligned // 2 + 7) // 8) * 8))
    S_pad = ((S_aligned + s_tile - 1) // s_tile) * s_tile
    num_tiles = S_pad // s_tile
    num_chunks = s_tile // 8

    # Glue: transpose to lane-dense (n, B), zero-pad the batch, fold lanes to
    # (n, S_pad, 128).  Zero padding => pred == tgt == 0 => rmspe contribution
    # of padded lanes is exactly 0, so the fused in-kernel sum needs no mask.
    pad = S_pad * 128 - B
    pred_t = jnp.pad(doa_predictions.astype(jnp.float32).T,
                     ((0, 0), (0, pad))).reshape(n, S_pad, 128)
    tgt_t = jnp.pad(doa_targets.astype(jnp.float32).T,
                    ((0, 0), (0, pad))).reshape(n, S_pad, 128)

    partials = pl.pallas_call(
        partial(_rmspe_kernel, n=n, num_chunks=num_chunks,
                masks_by_size=masks_by_size),
        out_shape=jax.ShapeDtypeStruct((num_tiles * 8, 128), jnp.float32),
        grid=(num_tiles,),
        in_specs=[
            pl.BlockSpec((n, s_tile, 128), lambda t: (0, t, 0)),
            pl.BlockSpec((n, s_tile, 128), lambda t: (0, t, 0)),
        ],
        out_specs=pl.BlockSpec((8, 128), lambda t: (t, 0)),
        compiler_params=pltpu.CompilerParams(
            dimension_semantics=("parallel",)),      # megacore sharding on v7x
    )(pred_t, tgt_t)

    # Final reduction over num_tiles tiny (8,128) partial blocks.
    # NOTE: accumulation is f32 (PyTorch double-precision sum would differ in ULPs).
    return jnp.sum(partials)


def _rmspe_ref_numpy(pred, tgt):
    """Pure NumPy reference (brute-force permutation == Hungarian optimum)."""
    pred = np.asarray(pred, dtype=np.float64)
    tgt = np.asarray(tgt, dtype=np.float64)
    B, n = pred.shape
    total = 0.0
    for b in range(B):
        best = np.inf
        for perm in permutations(range(n)):
            d = pred[b] - tgt[b, list(perm)]
            d = (d + np.pi / 2.0) % np.pi - np.pi / 2.0
            best = min(best, float(np.sum(d * d)))
        total += np.sqrt(best / n)
    return total


if __name__ == "__main__":
    key = jax.random.PRNGKey(0)
    k1, k2 = jax.random.split(key)
    B, n = 4, 3  # batch of 4 samples, 3 sources
    doa_pred = jax.random.uniform(
        k1, (B, n), minval=-np.pi / 2, maxval=np.pi / 2, dtype=jnp.float32)
    doa_tgt = jax.random.uniform(
        k2, (B, n), minval=-np.pi / 2, maxval=np.pi / 2, dtype=jnp.float32)

    loss = rmspe_loss(doa_pred, doa_tgt)
    loss = jax.block_until_ready(loss)

    ref = _rmspe_ref_numpy(doa_pred, doa_tgt)
    assert np.allclose(float(loss), ref, rtol=1e-4, atol=1e-5), (float(loss), ref)
    print("KERNEL_OK")
</pallas_src>

<mosaic_0001>
module attributes {stable_mosaic.version = 11 : i64} {
  func.func @_rmspe_kernel(%arg0: i32, %arg1: memref<3x8x128xf32, #tpu.memory_space<vmem>>, %arg2: memref<3x8x128xf32, #tpu.memory_space<vmem>>, %arg3: memref<8x128xf32, #tpu.memory_space<vmem>>) attributes {dimension_semantics = [#tpu.dimension_semantics<parallel>], iteration_bounds = array<i64: 1>, scalar_prefetch = 0 : i64, scratch_operands = 0 : i64, tpu.core_type = #tpu.core_type<tc>, window_params = [{transform_indices = @transform_0, window_bounds = array<i64: 3, 8, 128>}, {transform_indices = @transform_1, window_bounds = array<i64: 3, 8, 128>}, {transform_indices = @transform_2, window_bounds = array<i64: 8, 128>}]} {
    %cst = arith.constant 0.000000e+00 : f32
    %0 = vector.broadcast %cst : f32 to vector<8x128xf32>
    %cst_0 = arith.constant 1.57079637 : f32
    %cst_1 = arith.constant 0.318309873 : f32
    %cst_2 = arith.constant 3.14159274 : f32
    %cst_3 = arith.constant 0.333333343 : f32
    %c0_i32 = arith.constant 0 : i32
    %c8_i32 = arith.constant 8 : i32
    %1 = arith.muli %c0_i32, %c8_i32 : i32
    %2 = tpu.assume_multiple %1, 8 : i32
    %c0 = arith.constant 0 : index
    %3 = arith.index_cast %2 : i32 to index
    %c0_4 = arith.constant 0 : index
    %4 = vector.load %arg1[%c0, %3, %c0_4] : memref<3x8x128xf32, #tpu.memory_space<vmem>>, vector<3x8x128xf32>
    %c0_5 = arith.constant 0 : index
    %5 = arith.index_cast %2 : i32 to index
    %c0_6 = arith.constant 0 : index
    %6 = vector.load %arg2[%c0_5, %5, %c0_6] : memref<3x8x128xf32, #tpu.memory_space<vmem>>, vector<3x8x128xf32>
    %7 = vector.extract_strided_slice %4 {offsets = [0, 0, 0], sizes = [1, 8, 128], strides = [1, 1, 1]} : vector<3x8x128xf32> to vector<1x8x128xf32>
    %8 = vector.shape_cast %7 : vector<1x8x128xf32> to vector<8x128xf32>
    %9 = vector.extract_strided_slice %4 {offsets = [1, 0, 0], sizes = [1, 8, 128], strides = [1, 1, 1]} : vector<3x8x128xf32> to vector<1x8x128xf32>
    %10 = vector.shape_cast %9 : vector<1x8x128xf32> to vector<8x128xf32>
    %11 = vector.extract_strided_slice %4 {offsets = [2, 0, 0], sizes = [1, 8, 128], strides = [1, 1, 1]} : vector<3x8x128xf32> to vector<1x8x128xf32>
    %12 = vector.shape_cast %11 : vector<1x8x128xf32> to vector<8x128xf32>
    %13 = vector.extract_strided_slice %6 {offsets = [0, 0, 0], sizes = [1, 8, 128], strides = [1, 1, 1]} : vector<3x8x128xf32> to vector<1x8x128xf32>
    %14 = vector.shape_cast %13 : vector<1x8x128xf32> to vector<8x128xf32>
    %15 = vector.extract_strided_slice %6 {offsets = [1, 0, 0], sizes = [1, 8, 128], strides = [1, 1, 1]} : vector<3x8x128xf32> to vector<1x8x128xf32>
    %16 = vector.shape_cast %15 : vector<1x8x128xf32> to vector<8x128xf32>
    %17 = vector.extract_strided_slice %6 {offsets = [2, 0, 0], sizes = [1, 8, 128], strides = [1, 1, 1]} : vector<3x8x128xf32> to vector<1x8x128xf32>
    %18 = vector.shape_cast %17 : vector<1x8x128xf32> to vector<8x128xf32>
    %19 = arith.subf %8, %14 : vector<8x128xf32>
    %20 = vector.broadcast %cst_0 : f32 to vector<8x128xf32>
    %21 = arith.addf %19, %20 : vector<8x128xf32>
    %22 = vector.broadcast %cst_1 : f32 to vector<8x128xf32>
    %23 = arith.mulf %21, %22 : vector<8x128xf32>
    %24 = math.floor %23 : vector<8x128xf32>
    %25 = vector.broadcast %cst_2 : f32 to vector<8x128xf32>
    %26 = arith.mulf %25, %24 : vector<8x128xf32>
    %27 = arith.subf %21, %26 : vector<8x128xf32>
    %28 = vector.broadcast %cst_0 : f32 to vector<8x128xf32>
    %29 = arith.subf %27, %28 : vector<8x128xf32>
    %30 = arith.mulf %29, %29 : vector<8x128xf32>
    %31 = arith.subf %8, %16 : vector<8x128xf32>
    %32 = vector.broadcast %cst_0 : f32 to vector<8x128xf32>
    %33 = arith.addf %31, %32 : vector<8x128xf32>
    %34 = vector.broadcast %cst_1 : f32 to vector<8x128xf32>
    %35 = arith.mulf %33, %34 : vector<8x128xf32>
    %36 = math.floor %35 : vector<8x128xf32>
    %37 = vector.broadcast %cst_2 : f32 to vector<8x128xf32>
    %38 = arith.mulf %37, %36 : vector<8x128xf32>
    %39 = arith.subf %33, %38 : vector<8x128xf32>
    %40 = vector.broadcast %cst_0 : f32 to vector<8x128xf32>
    %41 = arith.subf %39, %40 : vector<8x128xf32>
    %42 = arith.mulf %41, %41 : vector<8x128xf32>
    %43 = arith.subf %8, %18 : vector<8x128xf32>
    %44 = vector.broadcast %cst_0 : f32 to vector<8x128xf32>
    %45 = arith.addf %43, %44 : vector<8x128xf32>
    %46 = vector.broadcast %cst_1 : f32 to vector<8x128xf32>
    %47 = arith.mulf %45, %46 : vector<8x128xf32>
    %48 = math.floor %47 : vector<8x128xf32>
    %49 = vector.broadcast %cst_2 : f32 to vector<8x128xf32>
    %50 = arith.mulf %49, %48 : vector<8x128xf32>
    %51 = arith.subf %45, %50 : vector<8x128xf32>
    %52 = vector.broadcast %cst_0 : f32 to vector<8x128xf32>
    %53 = arith.subf %51, %52 : vector<8x128xf32>
    %54 = arith.mulf %53, %53 : vector<8x128xf32>
    %55 = arith.subf %10, %14 : vector<8x128xf32>
    %56 = vector.broadcast %cst_0 : f32 to vector<8x128xf32>
    %57 = arith.addf %55, %56 : vector<8x128xf32>
    %58 = vector.broadcast %cst_1 : f32 to vector<8x128xf32>
    %59 = arith.mulf %57, %58 : vector<8x128xf32>
    %60 = math.floor %59 : vector<8x128xf32>
    %61 = vector.broadcast %cst_2 : f32 to vector<8x128xf32>
    %62 = arith.mulf %61, %60 : vector<8x128xf32>
    %63 = arith.subf %57, %62 : vector<8x128xf32>
    %64 = vector.broadcast %cst_0 : f32 to vector<8x128xf32>
    %65 = arith.subf %63, %64 : vector<8x128xf32>
    %66 = arith.mulf %65, %65 : vector<8x128xf32>
    %67 = arith.subf %10, %16 : vector<8x128xf32>
    %68 = vector.broadcast %cst_0 : f32 to vector<8x128xf32>
    %69 = arith.addf %67, %68 : vector<8x128xf32>
    %70 = vector.broadcast %cst_1 : f32 to vector<8x128xf32>
    %71 = arith.mulf %69, %70 : vector<8x128xf32>
    %72 = math.floor %71 : vector<8x128xf32>
    %73 = vector.broadcast %cst_2 : f32 to vector<8x128xf32>
    %74 = arith.mulf %73, %72 : vector<8x128xf32>
    %75 = arith.subf %69, %74 : vector<8x128xf32>
    %76 = vector.broadcast %cst_0 : f32 to vector<8x128xf32>
    %77 = arith.subf %75, %76 : vector<8x128xf32>
    %78 = arith.mulf %77, %77 : vector<8x128xf32>
    %79 = arith.subf %10, %18 : vector<8x128xf32>
    %80 = vector.broadcast %cst_0 : f32 to vector<8x128xf32>
    %81 = arith.addf %79, %80 : vector<8x128xf32>
    %82 = vector.broadcast %cst_1 : f32 to vector<8x128xf32>
    %83 = arith.mulf %81, %82 : vector<8x128xf32>
    %84 = math.floor %83 : vector<8x128xf32>
    %85 = vector.broadcast %cst_2 : f32 to vector<8x128xf32>
    %86 = arith.mulf %85, %84 : vector<8x128xf32>
    %87 = arith.subf %81, %86 : vector<8x128xf32>
    %88 = vector.broadcast %cst_0 : f32 to vector<8x128xf32>
    %89 = arith.subf %87, %88 : vector<8x128xf32>
    %90 = arith.mulf %89, %89 : vector<8x128xf32>
    %91 = arith.subf %12, %14 : vector<8x128xf32>
    %92 = vector.broadcast %cst_0 : f32 to vector<8x128xf32>
    %93 = arith.addf %91, %92 : vector<8x128xf32>
    %94 = vector.broadcast %cst_1 : f32 to vector<8x128xf32>
    %95 = arith.mulf %93, %94 : vector<8x128xf32>
    %96 = math.floor %95 : vector<8x128xf32>
    %97 = vector.broadcast %cst_2 : f32 to vector<8x128xf32>
    %98 = arith.mulf %97, %96 : vector<8x128xf32>
    %99 = arith.subf %93, %98 : vector<8x128xf32>
    %100 = vector.broadcast %cst_0 : f32 to vector<8x128xf32>
    %101 = arith.subf %99, %100 : vector<8x128xf32>
    %102 = arith.mulf %101, %101 : vector<8x128xf32>
    %103 = arith.subf %12, %16 : vector<8x128xf32>
    %104 = vector.broadcast %cst_0 : f32 to vector<8x128xf32>
    %105 = arith.addf %103, %104 : vector<8x128xf32>
    %106 = vector.broadcast %cst_1 : f32 to vector<8x128xf32>
    %107 = arith.mulf %105, %106 : vector<8x128xf32>
    %108 = math.floor %107 : vector<8x128xf32>
    %109 = vector.broadcast %cst_2 : f32 to vector<8x128xf32>
    %110 = arith.mulf %109, %108 : vector<8x128xf32>
    %111 = arith.subf %105, %110 : vector<8x128xf32>
    %112 = vector.broadcast %cst_0 : f32 to vector<8x128xf32>
    %113 = arith.subf %111, %112 : vector<8x128xf32>
    %114 = arith.mulf %113, %113 : vector<8x128xf32>
    %115 = arith.subf %12, %18 : vector<8x128xf32>
    %116 = vector.broadcast %cst_0 : f32 to vector<8x128xf32>
    %117 = arith.addf %115, %116 : vector<8x128xf32>
    %118 = vector.broadcast %cst_1 : f32 to vector<8x128xf32>
    %119 = arith.mulf %117, %118 : vector<8x128xf32>
    %120 = math.floor %119 : vector<8x128xf32>
    %121 = vector.broadcast %cst_2 : f32 to vector<8x128xf32>
    %122 = arith.mulf %121, %120 : vector<8x128xf32>
    %123 = arith.subf %117, %122 : vector<8x128xf32>
    %124 = vector.broadcast %cst_0 : f32 to vector<8x128xf32>
    %125 = arith.subf %123, %124 : vector<8x128xf32>
    %126 = arith.mulf %125, %125 : vector<8x128xf32>
    %127 = arith.addf %42, %66 : vector<8x128xf32>
    %128 = arith.addf %30, %78 : vector<8x128xf32>
    %129 = arith.minimumf %127, %128 : vector<8x128xf32>
    %130 = arith.addf %54, %66 : vector<8x128xf32>
    %131 = arith.addf %30, %90 : vector<8x128xf32>
    %132 = arith.minimumf %130, %131 : vector<8x128xf32>
    %133 = arith.addf %54, %78 : vector<8x128xf32>
    %134 = arith.addf %42, %90 : vector<8x128xf32>
    %135 = arith.minimumf %133, %134 : vector<8x128xf32>
    %136 = arith.addf %135, %102 : vector<8x128xf32>
    %137 = arith.addf %132, %114 : vector<8x128xf32>
    %138 = arith.minimumf %136, %137 : vector<8x128xf32>
    %139 = arith.addf %129, %126 : vector<8x128xf32>
    %140 = arith.minimumf %138, %139 : vector<8x128xf32>
    %141 = vector.broadcast %cst_3 : f32 to vector<8x128xf32>
    %142 = arith.mulf %140, %141 : vector<8x128xf32>
    %143 = math.sqrt %142 : vector<8x128xf32>
    %144 = arith.addf %0, %143 : vector<8x128xf32>
    %c1_i32 = arith.constant 1 : i32
    %c0_7 = arith.constant 0 : index
    %c0_8 = arith.constant 0 : index
    %145 = vector.load %arg3[%c0_7, %c0_8] : memref<8x128xf32, #tpu.memory_space<vmem>>, vector<8x128xf32>
    tpu.vector_store %arg3[%c0_7, %c0_8], %144 {strides = array<i32>} : memref<8x128xf32, #tpu.memory_space<vmem>>, vector<8x128xf32>,
    return
  }
  func.func @transform_0(%arg0: i32) -> (i32, i32, i32) {
    %c0_i32 = arith.constant 0 : i32
    %c0_i32_0 = arith.constant 0 : i32
    %c0_i32_1 = arith.constant 0 : i32
    return %c0_i32, %arg0, %c0_i32_0 : i32, i32, i32
  }
  func.func @transform_1(%arg0: i32) -> (i32, i32, i32) {
    %c0_i32 = arith.constant 0 : i32
    %c0_i32_0 = arith.constant 0 : i32
    %c0_i32_1 = arith.constant 0 : i32
    return %c0_i32, %arg0, %c0_i32_0 : i32, i32, i32
  }
  func.func @transform_2(%arg0: i32) -> (i32, i32) {
    %c0_i32 = arith.constant 0 : i32
    %c0_i32_0 = arith.constant 0 : i32
    return %arg0, %c0_i32 : i32, i32
  }
}

</mosaic_0001>

<llo_original>
// kernel: tpu_custom_call.1
$region0: #{tpu_custom_call.1}
  #allocation0 [shape = 'u32[]', space=smem, size = 0x4, offset = 0x4, fixed_abs, tag = 'smem constant byte address 0x4 - core index']
  #allocation1 [shape = 'u32[144,128]{1,0:T(1,128)}', space=vmem, size = 0x12000, scoped, tag = 'internal scratch']
  %s0 = inlined_call_operand.hbm [shape: f32[3,8,128], index: 0, kind: input, shape index: {}]
  %s1 = inlined_call_operand.hbm [shape: f32[3,8,128], index: 1, kind: input, shape index: {}]
  %s2 = inlined_call_operand.hbm [shape: f32[8,128], index: 2, kind: output, shape index: {}]
  %s3 = sld [smem:[#allocation0]]
  $region26: #{tpu_custom_call.1} parent=0
    _
  %s5 = ssub.s32 1, %s3
  %s6 = scalar_select 0, %s5, %s3
  $region1: #{tpu_custom_call.1} parent=0
    #allocation2 [shape = 'u8[12288]{0}', space=vmem, size = 0x3000, scoped, tag = 'input window, operand 0, single buffered']
    #allocation3 [shape = 's32[1]{0}', space=sflag, size = 0x4, scoped, tag = 'scoped memory for tpu_custom_call.1']
    #allocation4 [shape = 's32[1]{0}', space=sflag, size = 0x4, scoped, tag = 'scoped memory for tpu_custom_call.1']
    #allocation5 [shape = 'u8[12288]{0}', space=vmem, size = 0x3000, scoped, tag = 'input window, operand 1, single buffered']
    #allocation6 [shape = 's32[1]{0}', space=sflag, size = 0x4, scoped, tag = 'scoped memory for tpu_custom_call.1']
    #allocation7 [shape = 'u8[4096]{0}', space=vmem, size = 0x1000, scoped, tag = 'output window, operand 0, single buffered']
    %7 = vsyncpa [#allocation3], 0
    %8 = vsyncpa [#allocation6], 0
    %9 = vsyncpa [#allocation4], 0
    // Predicated region
    $region2: #{tpu_custom_call.1} parent=1 // pred_check
      _
    $region3: #{tpu_custom_call.1} parent=1 // pred_check_branch
      %11 = sbr.rel (0) target = $region5
    $region4: #{tpu_custom_call.1} parent=1 // pred_region
      %s13 = ssub.s32 384, 384
      %14 = vsyncadd [#allocation3], %s13
      %s15 = sshll.u32 [#allocation2], 4
      %s16 = int_to_ptr.vmem [resolvable:$true] %s15
      %21 = dma.hbm_to_vmem [thread:$0]  %s0, 384, %s16, [#allocation3], 128, 128, 8
    $region5: #{tpu_custom_call.1} parent=1 // pred_fallthru
      _
    // Predicated region
    $region6: #{tpu_custom_call.1} parent=1 // pred_check
      _
    $region7: #{tpu_custom_call.1} parent=1 // pred_check_branch
      %23 = sbr.rel (0) target = $region9
    $region8: #{tpu_custom_call.1} parent=1 // pred_region
      %s25 = ssub.s32 384, 384
      %26 = vsyncadd [#allocation6], %s25
      %s27 = sshll.u32 [#allocation5], 4
      %s28 = int_to_ptr.vmem [resolvable:$true] %s27
      %33 = dma.hbm_to_vmem [thread:$0]  %s1, 384, %s28, [#allocation6], 128, 128, 8
    $region9: #{tpu_custom_call.1} parent=1 // pred_fallthru
      _
    // Predicated region
    $region10: #{tpu_custom_call.1} parent=1 // pred_check
      _
    $region11: #{tpu_custom_call.1} parent=1 // pred_check_branch
      %35 = sbr.rel (0) target = $region13
    $region12: #{tpu_custom_call.1} parent=1 // pred_region
      %36 = dma.done [#allocation3], 384
    $region13: #{tpu_custom_call.1} parent=1 // pred_fallthru
      _
    // Predicated region
    $region14: #{tpu_custom_call.1} parent=1 // pred_check
      _
    $region15: #{tpu_custom_call.1} parent=1 // pred_check_branch
      %38 = sbr.rel (0) target = $region17
    $region16: #{tpu_custom_call.1} parent=1 // pred_region
      %39 = dma.done [#allocation6], 384
    $region17: #{tpu_custom_call.1} parent=1 // pred_fallthru
      _
    %v40 = vld [vmem:[#allocation2] sm:$0xff]
    %v41 = vld [vmem:[#allocation2 + $0x8] sm:$0xff]
    %v42 = vld [vmem:[#allocation2 + $0x10] sm:$0xff]
    %v43 = vld [vmem:[#allocation5] sm:$0xff]
    %v44 = vld [vmem:[#allocation5 + $0x8] sm:$0xff]
    %v45 = vld [vmem:[#allocation5 + $0x10] sm:$0xff]
    %v46 = vsub.f32 %v40, %v43
    %v47 = vadd.f32 %v46, 1.5707964
    %v48 = vmul.f32 %v47, 0.31830987
    %v49 = vfloor.f32 %v48
    %v50 = vmul.f32 %v49, 3.1415927
    %v51 = vsub.f32 %v47, %v50
    %v52 = vsub.f32 %v51, 1.5707964
    %v53 = vmul.f32 %v52, %v52
    %v54 = vsub.f32 %v40, %v44
    %v55 = vadd.f32 %v54, 1.5707964
    %v56 = vmul.f32 %v55, 0.31830987
    %v57 = vfloor.f32 %v56
    %v58 = vmul.f32 %v57, 3.1415927
    %v59 = vsub.f32 %v55, %v58
    %v60 = vsub.f32 %v59, 1.5707964
    %v61 = vmul.f32 %v60, %v60
    %v62 = vsub.f32 %v40, %v45
    %v63 = vadd.f32 %v62, 1.5707964
    %v64 = vmul.f32 %v63, 0.31830987
    %v65 = vfloor.f32 %v64
    %v66 = vmul.f32 %v65, 3.1415927
    %v67 = vsub.f32 %v63, %v66
    %v68 = vsub.f32 %v67, 1.5707964
    %v69 = vmul.f32 %v68, %v68
    %v70 = vsub.f32 %v41, %v43
    %v71 = vadd.f32 %v70, 1.5707964
    %v72 = vmul.f32 %v71, 0.31830987
    %v73 = vfloor.f32 %v72
    %v74 = vmul.f32 %v73, 3.1415927
    %v75 = vsub.f32 %v71, %v74
    %v76 = vsub.f32 %v75, 1.5707964
    %v77 = vmul.f32 %v76, %v76
    %v78 = vsub.f32 %v41, %v44
    %v79 = vadd.f32 %v78, 1.5707964
    %v80 = vmul.f32 %v79, 0.31830987
    %v81 = vfloor.f32 %v80
    %v82 = vmul.f32 %v81, 3.1415927
    %v83 = vsub.f32 %v79, %v82
    %v84 = vsub.f32 %v83, 1.5707964
    %v85 = vmul.f32 %v84, %v84
    %v86 = vsub.f32 %v41, %v45
    %v87 = vadd.f32 %v86, 1.5707964
    %v88 = vmul.f32 %v87, 0.31830987
    %v89 = vfloor.f32 %v88
    %v90 = vmul.f32 %v89, 3.1415927
    %v91 = vsub.f32 %v87, %v90
    %v92 = vsub.f32 %v91, 1.5707964
    %v93 = vmul.f32 %v92, %v92
    %v94 = vsub.f32 %v42, %v43
    %v95 = vadd.f32 %v94, 1.5707964
    %v96 = vmul.f32 %v95, 0.31830987
    %v97 = vfloor.f32 %v96
    %v98 = vmul.f32 %v97, 3.1415927
    %v99 = vsub.f32 %v95, %v98
    %v100 = vsub.f32 %v99, 1.5707964
    %v101 = vmul.f32 %v100, %v100
    %v102 = vsub.f32 %v42, %v44
    %v103 = vadd.f32 %v102, 1.5707964
    %v104 = vmul.f32 %v103, 0.31830987
    %v105 = vfloor.f32 %v104
    %v106 = vmul.f32 %v105, 3.1415927
    %v107 = vsub.f32 %v103, %v106
    %v108 = vsub.f32 %v107, 1.5707964
    %v109 = vmul.f32 %v108, %v108
    %v110 = vsub.f32 %v42, %v45
    %v111 = vadd.f32 %v110, 1.5707964
    %v112 = vmul.f32 %v111, 0.31830987
    %v113 = vfloor.f32 %v112
    %v114 = vmul.f32 %v113, 3.1415927
    %v115 = vsub.f32 %v111, %v114
    %v116 = vsub.f32 %v115, 1.5707964
    %v117 = vmul.f32 %v116, %v116
    %v118 = vadd.f32 %v61, %v77
    %v119 = vadd.f32 %v53, %v85
    %v120 = vmin.f32 %v118, %v119
    %v121 = vadd.f32 %v69, %v77
    %v122 = vadd.f32 %v53, %v93
    %v123 = vmin.f32 %v121, %v122
    %v124 = vadd.f32 %v69, %v85
    %v125 = vadd.f32 %v61, %v93
    %v126 = vmin.f32 %v124, %v125
    %v127 = vadd.f32 %v126, %v101
    %v128 = vadd.f32 %v123, %v109
    %v129 = vmin.f32 %v127, %v128
    %v130 = vadd.f32 %v120, %v117
    %v131 = vmin.f32 %v129, %v130
    %v132 = vmul.f32 %v131, 0.33333334
    %v133 = vrsqrt.pop %v132
    %v134 = vmul.f32 %v132, %v133
    %vm135 = vcmp.eq.f32.partialorder %v132, inf
    %v136 = vsel %vm135, %v132, %v134
    %vm137 = vcmp.eq.f32.partialorder %v132, 0.0
    %v138 = vand.u32 %v132, 2147483648
    %v139 = vsel %vm137, %v138, %v136
    %v140 = vadd.f32 %v139, 0.0
    %141 = vst [vmem:[#allocation7] sm:$0xff] %v140
    // Predicated region
    $region18: #{tpu_custom_call.1} parent=1 // pred_check
      _
    $region19: #{tpu_custom_call.1} parent=1 // pred_check_branch
      %143 = sbr.rel (0) target = $region21
    $region20: #{tpu_custom_call.1} parent=1 // pred_region
      %s145 = ssub.s32 128, 128
      %146 = vsyncadd [#allocation4], %s145
      %s148 = sshll.u32 [#allocation7], 4
      %s149 = int_to_ptr.vmem [resolvable:$true] %s148
      %151 = dma.vmem_to_hbm [thread:$0]  %s149, 128, %s2, [#allocation4]
    $region21: #{tpu_custom_call.1} parent=1 // pred_fallthru
      _
    // Predicated region
    $region22: #{tpu_custom_call.1} parent=1 // pred_check
      _
    $region23: #{tpu_custom_call.1} parent=1 // pred_check_branch
      %153 = sbr.rel (0) target = $region25
    $region24: #{tpu_custom_call.1} parent=1 // pred_region
      %154 = dma.done [#allocation4], 128
    $region25: #{tpu_custom_call.1} parent=1 // pred_fallthru
      _
    %155 = vsyncpa [#allocation3], 1
    %156 = vsyncpa [#allocation6], 1
    %157 = vsyncpa [#allocation4], 1

</llo_original>
